<compile_context>
chip_gen: v6e
topology: v6e:2x2x1
jax: 0.10.0
libtpu: 0.0.40
codegen_flags: <defaults>
</compile_context>

<pallas_src>
import jax
import jax.numpy as jnp
from jax.experimental import pallas as pl
from jax.experimental.pallas import tpu as pltpu

EPS = 1e-07
THRESHOLD = 0.5
_LANE = 128


def _tpu_kind():
    try:
        dev = jax.devices()[0]
        return (getattr(dev, "device_kind", "") or "").lower()
    except Exception:
        return ""


def _make_recall_kernel(tile_rows, m_rows, blocks_per_core, num_blocks,
                        needs_mask, has_core_axis, acc_rows):
    """Streaming (tp, sum_gt) reduction kernel with static info baked in."""

    def kernel(pr_ref, gt_ref, out_ref, tp_acc, gt_acc):
        if has_core_axis:
            c = pl.program_id(0)                 # core-split axis (CORE_PARALLEL)
            k = pl.program_id(1)                 # streaming reduction axis
            k_last = pl.num_programs(1) - 1
            logical_block = c * blocks_per_core + k
        else:
            k = pl.program_id(0)                 # single streaming axis
            k_last = pl.num_programs(0) - 1
            logical_block = k

        @pl.when(k == 0)
        def _():
            tp_acc[...] = jnp.zeros_like(tp_acc)
            gt_acc[...] = jnp.zeros_like(gt_acc)

        pred_mask = pr_ref[...] > THRESHOLD      # threshold in native dtype
        gt_f = gt_ref[...].astype(jnp.float32)   # widen only for accumulation

        def accumulate(gt_vals):
            tp_contrib = jnp.where(pred_mask, gt_vals, 0.0)   # == gt * (pr > thr)
            if acc_rows == 8:
                # Regroup sublanes -> pure VALU vadds; defer XLU reduce to finalize.
                tp_acc[...] += tp_contrib.reshape(tile_rows // 8, 8, _LANE).sum(axis=0)
                gt_acc[...] += gt_vals.reshape(tile_rows // 8, 8, _LANE).sum(axis=0)
            else:
                tp_acc[...] += jnp.sum(tp_contrib, axis=0, keepdims=True)
                gt_acc[...] += jnp.sum(gt_vals, axis=0, keepdims=True)

        if needs_mask:
            # Only the last real block (possibly partial) and any clamped
            # "phantom" block need the row mask; interior blocks are mask-free.
            is_boundary = logical_block >= (num_blocks - 1)

            @pl.when(is_boundary)
            def _():
                row_ids = jax.lax.broadcasted_iota(jnp.int32, (tile_rows, _LANE), 0)
                valid = (logical_block * tile_rows + row_ids) < m_rows
                accumulate(jnp.where(valid, gt_f, 0.0))

            @pl.when(jnp.logical_not(is_boundary))
            def _():
                accumulate(gt_f)
        else:
            accumulate(gt_f)

        @pl.when(k == k_last)
        def _():
            out_ref[0, 0] = jnp.sum(tp_acc[...])
            out_ref[0, 1] = jnp.sum(gt_acc[...])

    return kernel


def recall_pallas(y_pr, y_gt):
    """Scalar recall score; streaming (tp, sum_gt) reduction done in Pallas."""
    assert y_pr.shape == y_gt.shape
    n = int(y_pr.size)

    kind = _tpu_kind()
    num_tc = 2 if "v7" in kind else 1                       # v7x: 2 TCs / chip
    max_tile_rows = 8192 if ("v6" in kind or "v7" in kind) else 4096

    pr_flat = y_pr.reshape(-1)
    gt_flat = y_gt.reshape(-1)

    n_main = n - (n % _LANE)

    # Sub-128 tail: plain jnp in the wrapper (no full-array pad / extra copy).
    if n_main < n:
        pr_tail = pr_flat[n_main:]
        gt_tail = gt_flat[n_main:].astype(jnp.float32)
        tail_tp = jnp.sum(jnp.where(pr_tail > THRESHOLD, gt_tail, 0.0))
        tail_gt = jnp.sum(gt_tail)
    else:
        tail_tp = jnp.float32(0.0)
        tail_gt = jnp.float32(0.0)

    if n_main == 0:
        tp = tail_tp
        gt_sum = tail_gt
    else:
        m = n_main // _LANE
        pr_main = pr_flat if n_main == n else pr_flat[:n_main]
        gt_main = gt_flat if n_main == n else gt_flat[:n_main]
        pr2d = pr_main.reshape(m, _LANE)        # contiguous reshape: no copy
        gt2d = gt_main.reshape(m, _LANE)

        tile_rows = m if m < max_tile_rows else max_tile_rows
        num_blocks = -(-m // tile_rows)

        use_core_split = (num_tc == 2) and (num_blocks >= num_tc)

        if use_core_split:
            blocks_per_core = -(-num_blocks // num_tc)
            needs_mask = (m % tile_rows != 0) or (blocks_per_core * num_tc != num_blocks)
            grid = (num_tc, blocks_per_core)

            def block_index(c, k):
                # Clamp so boundary / phantom blocks never index past the array;
                # their contribution is zeroed by the in-kernel row mask.
                return (jnp.minimum(c * blocks_per_core + k, num_blocks - 1), 0)

            out_rows = num_tc
            out_spec = pl.BlockSpec((1, 2), lambda c, k: (c, 0),
                                    memory_space=pltpu.MemorySpace.SMEM)
            dim_sem = (pltpu.CORE_PARALLEL, pltpu.ARBITRARY)
        else:
            blocks_per_core = num_blocks
            needs_mask = (m % tile_rows != 0)
            grid = (num_blocks,)

            def block_index(k):
                return (k, 0)

            out_rows = 1
            out_spec = pl.BlockSpec((1, 2), lambda k: (0, 0),
                                    memory_space=pltpu.MemorySpace.SMEM)
            dim_sem = ("arbitrary",)

        acc_rows = 8 if tile_rows % 8 == 0 else 1

        kernel = _make_recall_kernel(tile_rows, m, blocks_per_core, num_blocks,
                                     needs_mask, use_core_split, acc_rows)

        partials = pl.pallas_call(
            kernel,
            out_shape=jax.ShapeDtypeStruct((out_rows, 2), jnp.float32),
            grid_spec=pltpu.PrefetchScalarGridSpec(
                num_scalar_prefetch=0,
                grid=grid,
                in_specs=[
                    pl.BlockSpec((tile_rows, _LANE), block_index),
                    pl.BlockSpec((tile_rows, _LANE), block_index),
                ],
                out_specs=out_spec,
                scratch_shapes=[
                    pltpu.VMEM((acc_rows, _LANE), jnp.float32),   # tp partials
                    pltpu.VMEM((acc_rows, _LANE), jnp.float32),   # sum(gt) partials
                ],
            ),
            compiler_params=pltpu.CompilerParams(dimension_semantics=dim_sem),
        )(pr2d, gt2d)

        tp = jnp.sum(partials[:, 0]) + tail_tp
        gt_sum = jnp.sum(partials[:, 1]) + tail_gt

    fn = gt_sum - tp
    return (tp + EPS) / (tp + fn + EPS)


def recall_reference(y_pr, y_gt):
    pr = (y_pr > THRESHOLD).astype(y_pr.dtype)
    tp = jnp.sum(y_gt * pr)
    fn = jnp.sum(y_gt) - tp
    return (tp + EPS) / (tp + fn + EPS)


if __name__ == "__main__":
    key = jax.random.PRNGKey(0)
    k1, k2, k3, k4 = jax.random.split(key, 4)

    # Primary case: lane-aligned NCHW segmentation logits / binary masks.
    B, C, H, W = 2, 4, 16, 16
    y_pr = jax.random.uniform(k1, (B, C, H, W), dtype=jnp.float32)
    y_gt = (jax.random.uniform(k2, (B, C, H, W)) > 0.5).astype(jnp.float32)

    score = jax.block_until_ready(recall_pallas(y_pr, y_gt))
    ref = recall_reference(y_pr, y_gt)
    assert jnp.allclose(score, ref, rtol=1e-5, atol=1e-6), (score, ref)

    # Ragged case: numel not a multiple of 128 (exercises jnp tail path).
    y_pr2 = jax.random.uniform(k3, (2, 3, 7, 11), dtype=jnp.float32)
    y_gt2 = (jax.random.uniform(k4, (2, 3, 7, 11)) > 0.5).astype(jnp.float32)

    score2 = jax.block_until_ready(recall_pallas(y_pr2, y_gt2))
    ref2 = recall_reference(y_pr2, y_gt2)
    assert jnp.allclose(score2, ref2, rtol=1e-5, atol=1e-6), (score2, ref2)

    print("KERNEL_OK")
</pallas_src>

<mosaic_0001>
module attributes {stable_mosaic.version = 11 : i64} {
  func.func @kernel(%arg0: i32, %arg1: memref<16x128xf32, #tpu.memory_space<vmem>>, %arg2: memref<16x128xf32, #tpu.memory_space<vmem>>, %arg3: memref<1x2xf32, #tpu.memory_space<smem>>, %arg4: memref<8x128xf32, #tpu.memory_space<vmem>>, %arg5: memref<8x128xf32, #tpu.memory_space<vmem>>) attributes {dimension_semantics = [#tpu.dimension_semantics<arbitrary>], iteration_bounds = array<i64: 1>, scalar_prefetch = 0 : i64, scratch_operands = 2 : i64, tpu.core_type = #tpu.core_type<tc>, window_params = [{transform_indices = @transform_0, window_bounds = array<i64: 16, 128>}, {transform_indices = @transform_1, window_bounds = array<i64: 16, 128>}, {transform_indices = @transform_2, window_bounds = array<i64: 1, 2>}]} {
    %c0_i32 = arith.constant 0 : i32
    %0 = arith.cmpi eq, %arg0, %c0_i32 : i32
    %1 = arith.extui %0 : i1 to i32
    %c0_i32_0 = arith.constant 0 : i32
    %2 = arith.cmpi ne, %1, %c0_i32_0 : i32
    scf.if %2 {
      %cst_17 = arith.constant 0.000000e+00 : f32
      %22 = vector.broadcast %cst_17 : f32 to vector<8x128xf32>
      %c0_18 = arith.constant 0 : index
      %c0_19 = arith.constant 0 : index
      %23 = vector.load %arg4[%c0_18, %c0_19] : memref<8x128xf32, #tpu.memory_space<vmem>>, vector<8x128xf32>
      tpu.vector_store %arg4[%c0_18, %c0_19], %22 {strides = array<i32>} : memref<8x128xf32, #tpu.memory_space<vmem>>, vector<8x128xf32>,
      %cst_20 = arith.constant 0.000000e+00 : f32
      %24 = vector.broadcast %cst_20 : f32 to vector<8x128xf32>
      %c0_21 = arith.constant 0 : index
      %c0_22 = arith.constant 0 : index
      %25 = vector.load %arg5[%c0_21, %c0_22] : memref<8x128xf32, #tpu.memory_space<vmem>>, vector<8x128xf32>
      tpu.vector_store %arg5[%c0_21, %c0_22], %24 {strides = array<i32>} : memref<8x128xf32, #tpu.memory_space<vmem>>, vector<8x128xf32>,
    } else {
    }
    %c0 = arith.constant 0 : index
    %c0_1 = arith.constant 0 : index
    %3 = vector.load %arg1[%c0, %c0_1] : memref<16x128xf32, #tpu.memory_space<vmem>>, vector<16x128xf32>
    %cst = arith.constant 5.000000e-01 : f32
    %4 = vector.broadcast %cst : f32 to vector<16x128xf32>
    %5 = arith.cmpf ogt, %3, %4 : vector<16x128xf32>
    %c0_2 = arith.constant 0 : index
    %c0_3 = arith.constant 0 : index
    %6 = vector.load %arg2[%c0_2, %c0_3] : memref<16x128xf32, #tpu.memory_space<vmem>>, vector<16x128xf32>
    %cst_4 = arith.constant 0.000000e+00 : f32
    %7 = vector.broadcast %cst_4 : f32 to vector<16x128xf32>
    %8 = arith.select %5, %6, %7 : vector<16x128xi1>, vector<16x128xf32>
    %c0_5 = arith.constant 0 : index
    %c0_6 = arith.constant 0 : index
    %9 = vector.load %arg4[%c0_5, %c0_6] : memref<8x128xf32, #tpu.memory_space<vmem>>, vector<8x128xf32>
    %10 = vector.shape_cast %8 : vector<16x128xf32> to vector<2x8x128xf32>
    %cst_7 = arith.constant dense<0.000000e+00> : vector<8x128xf32>
    %11 = vector.multi_reduction <add>, %10, %cst_7 [0] : vector<2x8x128xf32> to vector<8x128xf32>
    %12 = arith.addf %9, %11 : vector<8x128xf32>
    %c0_8 = arith.constant 0 : index
    %c0_9 = arith.constant 0 : index
    %13 = vector.load %arg4[%c0_8, %c0_9] : memref<8x128xf32, #tpu.memory_space<vmem>>, vector<8x128xf32>
    tpu.vector_store %arg4[%c0_8, %c0_9], %12 {strides = array<i32>} : memref<8x128xf32, #tpu.memory_space<vmem>>, vector<8x128xf32>,
    %c0_10 = arith.constant 0 : index
    %c0_11 = arith.constant 0 : index
    %14 = vector.load %arg5[%c0_10, %c0_11] : memref<8x128xf32, #tpu.memory_space<vmem>>, vector<8x128xf32>
    %15 = vector.shape_cast %6 : vector<16x128xf32> to vector<2x8x128xf32>
    %cst_12 = arith.constant dense<0.000000e+00> : vector<8x128xf32>
    %16 = vector.multi_reduction <add>, %15, %cst_12 [0] : vector<2x8x128xf32> to vector<8x128xf32>
    %17 = arith.addf %14, %16 : vector<8x128xf32>
    %c0_13 = arith.constant 0 : index
    %c0_14 = arith.constant 0 : index
    %18 = vector.load %arg5[%c0_13, %c0_14] : memref<8x128xf32, #tpu.memory_space<vmem>>, vector<8x128xf32>
    tpu.vector_store %arg5[%c0_13, %c0_14], %17 {strides = array<i32>} : memref<8x128xf32, #tpu.memory_space<vmem>>, vector<8x128xf32>,
    %c0_i32_15 = arith.constant 0 : i32
    %19 = arith.cmpi eq, %arg0, %c0_i32_15 : i32
    %20 = arith.extui %19 : i1 to i32
    %c0_i32_16 = arith.constant 0 : i32
    %21 = arith.cmpi ne, %20, %c0_i32_16 : i32
    scf.if %21 {
      %c0_17 = arith.constant 0 : index
      %c0_18 = arith.constant 0 : index
      %22 = vector.load %arg4[%c0_17, %c0_18] : memref<8x128xf32, #tpu.memory_space<vmem>>, vector<8x128xf32>
      %23 = vector.shape_cast %22 : vector<8x128xf32> to vector<1x8x128xf32>
      %cst_19 = arith.constant dense<0.000000e+00> : vector<1xf32>
      %24 = vector.multi_reduction <add>, %23, %cst_19 [1, 2] : vector<1x8x128xf32> to vector<1xf32>
      %25 = vector.shape_cast %24 : vector<1xf32> to vector<1x1x1xf32>
      %26 = vector.extract %25[0, 0, 0] : f32 from vector<1x1x1xf32>
      %c0_20 = arith.constant 0 : index
      %c0_21 = arith.constant 0 : index
      %27 = memref.load %arg3[%c0_20, %c0_21] : memref<1x2xf32, #tpu.memory_space<smem>>
      memref.store %26, %arg3[%c0_20, %c0_21] : memref<1x2xf32, #tpu.memory_space<smem>>
      %c0_22 = arith.constant 0 : index
      %c0_23 = arith.constant 0 : index
      %28 = vector.load %arg5[%c0_22, %c0_23] : memref<8x128xf32, #tpu.memory_space<vmem>>, vector<8x128xf32>
      %29 = vector.shape_cast %28 : vector<8x128xf32> to vector<1x8x128xf32>
      %cst_24 = arith.constant dense<0.000000e+00> : vector<1xf32>
      %30 = vector.multi_reduction <add>, %29, %cst_24 [1, 2] : vector<1x8x128xf32> to vector<1xf32>
      %31 = vector.shape_cast %30 : vector<1xf32> to vector<1x1x1xf32>
      %32 = vector.extract %31[0, 0, 0] : f32 from vector<1x1x1xf32>
      %c0_25 = arith.constant 0 : index
      %c1 = arith.constant 1 : index
      %33 = memref.load %arg3[%c0_25, %c1] : memref<1x2xf32, #tpu.memory_space<smem>>
      memref.store %32, %arg3[%c0_25, %c1] : memref<1x2xf32, #tpu.memory_space<smem>>
    } else {
    }
    return
  }
  func.func @transform_0(%arg0: i32) -> (i32, i32) {
    %c0_i32 = arith.constant 0 : i32
    %c0_i32_0 = arith.constant 0 : i32
    return %arg0, %c0_i32 : i32, i32
  }
  func.func @transform_1(%arg0: i32) -> (i32, i32) {
    %c0_i32 = arith.constant 0 : i32
    %c0_i32_0 = arith.constant 0 : i32
    return %arg0, %c0_i32 : i32, i32
  }
  func.func @transform_2(%arg0: i32) -> (i32, i32) {
    %c0_i32 = arith.constant 0 : i32
    %c0_i32_0 = arith.constant 0 : i32
    %c0_i32_1 = arith.constant 0 : i32
    return %c0_i32, %c0_i32_0 : i32, i32
  }
}

</mosaic_0001>

<llo_original>
// kernel: tpu_custom_call.1
$region0: #{tpu_custom_call.1}
  #allocation0 [shape = 'u32[]', space=smem, size = 0x4, offset = 0x4, fixed_abs, tag = 'smem constant byte address 0x4 - core index']
  #allocation1 [shape = 'u32[144,128]{1,0:T(1,128)}', space=vmem, size = 0x12000, scoped, tag = 'internal scratch']
  #allocation2 [shape = 'f32[8,128]{1,0:T(8,128)}', space=vmem, size = 0x1000, scoped, tag = 'scratch operand']
  #allocation3 [shape = 'f32[8,128]{1,0:T(8,128)}', space=vmem, size = 0x1000, scoped, tag = 'scratch operand']
  %s0 = inlined_call_operand.hbm [shape: f32[16,128], index: 0, kind: input, shape index: {}]
  %s1 = inlined_call_operand.hbm [shape: f32[16,128], index: 1, kind: input, shape index: {}]
  %s2 = inlined_call_operand.hbm [shape: f32[1,2], index: 2, kind: output, shape index: {}]
  %s3 = sld [smem:[#allocation0]]
  $region34: #{tpu_custom_call.1} parent=0
    _
  %s5 = ssub.s32 1, %s3
  %s6 = scalar_select 0, %s5, %s3
  $region1: #{tpu_custom_call.1} parent=0
    #allocation4 [shape = 'u8[8192]{0}', space=vmem, size = 0x2000, scoped, tag = 'input window, operand 0, single buffered']
    #allocation5 [shape = 's32[1]{0}', space=sflag, size = 0x4, scoped, tag = 'scoped memory for tpu_custom_call.1']
    #allocation6 [shape = 's32[1]{0}', space=sflag, size = 0x4, scoped, tag = 'scoped memory for tpu_custom_call.1']
    #allocation7 [shape = 'u8[8192]{0}', space=vmem, size = 0x2000, scoped, tag = 'input window, operand 1, single buffered']
    #allocation8 [shape = 's32[1]{0}', space=sflag, size = 0x4, scoped, tag = 'scoped memory for tpu_custom_call.1']
    #allocation9 [shape = 'u8[512]{0}', space=smem, size = 0x200, scoped, tag = 'output window, operand 0, single buffered']
    %7 = vsyncpa [#allocation5], 0
    %8 = vsyncpa [#allocation8], 0
    %9 = vsyncpa [#allocation6], 0
    // Predicated region
    $region2: #{tpu_custom_call.1} parent=1 // pred_check
      _
    $region3: #{tpu_custom_call.1} parent=1 // pred_check_branch
      %11 = sbr.rel (0) target = $region5
    $region4: #{tpu_custom_call.1} parent=1 // pred_region
      %s13 = ssub.s32 256, 256
      %14 = vsyncadd [#allocation5], %s13
      %s15 = sshll.u32 [#allocation4], 4
      %s16 = int_to_ptr.vmem [resolvable:$true] %s15
      %21 = dma.hbm_to_vmem [thread:$0]  %s0, 256, %s16, [#allocation5], 128, 128, 8
    $region5: #{tpu_custom_call.1} parent=1 // pred_fallthru
      _
    // Predicated region
    $region6: #{tpu_custom_call.1} parent=1 // pred_check
      _
    $region7: #{tpu_custom_call.1} parent=1 // pred_check_branch
      %23 = sbr.rel (0) target = $region9
    $region8: #{tpu_custom_call.1} parent=1 // pred_region
      %s25 = ssub.s32 256, 256
      %26 = vsyncadd [#allocation8], %s25
      %s27 = sshll.u32 [#allocation7], 4
      %s28 = int_to_ptr.vmem [resolvable:$true] %s27
      %33 = dma.hbm_to_vmem [thread:$0]  %s1, 256, %s28, [#allocation8], 128, 128, 8
    $region9: #{tpu_custom_call.1} parent=1 // pred_fallthru
      _
    // Predicated region
    $region10: #{tpu_custom_call.1} parent=1 // pred_check
      _
    $region11: #{tpu_custom_call.1} parent=1 // pred_check_branch
      %35 = sbr.rel (0) target = $region13
    $region12: #{tpu_custom_call.1} parent=1 // pred_region
      %36 = dma.done [#allocation5], 256
    $region13: #{tpu_custom_call.1} parent=1 // pred_fallthru
      _
    // Predicated region
    $region14: #{tpu_custom_call.1} parent=1 // pred_check
      _
    $region15: #{tpu_custom_call.1} parent=1 // pred_check_branch
      %38 = sbr.rel (0) target = $region17
    $region16: #{tpu_custom_call.1} parent=1 // pred_region
      %39 = dma.done [#allocation8], 256
    $region17: #{tpu_custom_call.1} parent=1 // pred_fallthru
      _
    %p40 = scmp.eq.s32.totalorder 0, 0
    // Predicated region
    $region18: #{tpu_custom_call.1} parent=1 // pred_check
      %p41 = pneg %p40
    $region19: #{tpu_custom_call.1} parent=1 // pred_check_branch
      %43 = sbr.rel (%p41) target = $region21
    $region20: #{tpu_custom_call.1} parent=1 // pred_region
      %44 = vst [vmem:[#allocation2] sm:$0xff] 0.0
      %45 = vst [vmem:[#allocation3] sm:$0xff] 0.0
    $region21: #{tpu_custom_call.1} parent=1 // pred_fallthru
      _
    %v46 = vld [vmem:[#allocation4] sm:$0xff]
    %v47 = vld [vmem:[#allocation4 + $0x8] sm:$0xff]
    %vm48 = vcmp.gt.f32.partialorder %v46, 0.5
    %vm49 = vcmp.gt.f32.partialorder %v47, 0.5
    %v50 = vld [vmem:[#allocation7] sm:$0xff]
    %v51 = vld [vmem:[#allocation7 + $0x8] sm:$0xff]
    %v52 = vsel %vm48, %v50, 0.0
    %v53 = vsel %vm49, %v51, 0.0
    %v54 = vld [vmem:[#allocation2] sm:$0xff]
    %v55 = vadd.f32 %v52, %v53
    %v56 = vadd.f32 %v54, %v55
    %57 = vst [vmem:[#allocation2] sm:$0xff] %v56
    %v58 = vld [vmem:[#allocation3] sm:$0xff]
    %v59 = vadd.f32 %v50, %v51
    %v60 = vadd.f32 %v58, %v59
    %61 = vst [vmem:[#allocation3] sm:$0xff] %v60
    // Predicated region
    $region22: #{tpu_custom_call.1} parent=1 // pred_check
      %p62 = pneg %p40
    $region23: #{tpu_custom_call.1} parent=1 // pred_check_branch
      %64 = sbr.rel (%p62) target = $region25
    $region24: #{tpu_custom_call.1} parent=1 // pred_region
      %v65 = vld [vmem:[#allocation2] sm:$0xff]
      %66 = vadd.xlane.f32.xlu0 %v65
      %v67 = vpop.xlane.xlu0 %66
      %v68 = vrot.slane %v67, 4
      %v69 = vadd.f32 %v67, %v68
      %v70 = vrot.slane %v69, 2
      %v71 = vadd.f32 %v69, %v70
      %v72 = vrot.slane %v71, 1
      %v73 = vadd.f32 %v71, %v72
      %s74 = vtos %v73
      %s75 = scalar_lea.smem [#allocation9], 0
      %76 = sst [smem:[%s75]] %s74
      %v77 = vld [vmem:[#allocation3] sm:$0xff]
      %78 = vadd.xlane.f32.xlu0 %v77
      %v79 = vpop.xlane.xlu0 %78
      %v80 = vrot.slane %v79, 4
      %v81 = vadd.f32 %v79, %v80
      %v82 = vrot.slane %v81, 2
      %v83 = vadd.f32 %v81, %v82
      %v84 = vrot.slane %v83, 1
      %v85 = vadd.f32 %v83, %v84
      %s86 = vtos %v85
      %s87 = scalar_lea.smem [#allocation9], 1
      %88 = sst [smem:[%s87]] %s86
    $region25: #{tpu_custom_call.1} parent=1 // pred_fallthru
      _
    // Predicated region
    $region26: #{tpu_custom_call.1} parent=1 // pred_check
      _
    $region27: #{tpu_custom_call.1} parent=1 // pred_check_branch
      %90 = sbr.rel (0) target = $region29
    $region28: #{tpu_custom_call.1} parent=1 // pred_region
      %s92 = ssub.s32 16, 16
      %93 = vsyncadd [#allocation6], %s92
      %96 = dma.smem_to_hbm [#allocation9], 16, %s2, [#allocation6]
    $region29: #{tpu_custom_call.1} parent=1 // pred_fallthru
      _
    // Predicated region
    $region30: #{tpu_custom_call.1} parent=1 // pred_check
      _
    $region31: #{tpu_custom_call.1} parent=1 // pred_check_branch
      %98 = sbr.rel (0) target = $region33
    $region32: #{tpu_custom_call.1} parent=1 // pred_region
      %99 = dma.done [#allocation6], 16
    $region33: #{tpu_custom_call.1} parent=1 // pred_fallthru
      _
    %100 = sfence
    %101 = vsyncpa [#allocation5], 1
    %102 = vsyncpa [#allocation8], 1
    %103 = vsyncpa [#allocation6], 1

</llo_original>
